<compile_context>
chip_gen: v7x
topology: tpu7x:2x2x1
jax: 0.10.0
libtpu: 0.0.40
codegen_flags: <defaults>
</compile_context>

<pallas_src>
import math

import jax
import jax.numpy as jnp
from jax.experimental import pallas as pl
from jax.experimental.pallas import tpu as pltpu

HIDDEN = 64       # LSTM hidden size
FC1 = 128         # fc1 output features
NUM_CLASSES = 5   # fc2 output features


def net_kernel(x_ref, slab_ref, whh_ref, w12_ref, out_ref):
    """LSTM recurrence (to final cell state) + folded fc1∘fc2 in one kernel.

    x_ref    : (batch, seq)  f32   (x transposed to batch-major in wrapper)
    slab_ref : (3, 4H)       f32   row0: input-proj weight (g rows pre-scaled x2)
                                   row1: b_ih + b_hh      (same repack/scale)
                                   row2: folded fc bias b12 in lanes [0, 5)
    whh_ref  : (H, 4H)       bf16  recurrent weight, [i,f,o,2*g] repack, transposed
    w12_ref  : (H, 5)        bf16  folded fc weight  w1.T @ w2.T
    out_ref  : (batch, 5)    f32
    """
    batch, seq = x_ref.shape
    H = HIDDEN

    x_bt = x_ref[...]                               # (batch, seq)
    slab = slab_ref[...]                            # (3, 4H)
    wih = slab[0:1, :]                              # (1, 4H)
    bg = slab[1:2, :]                               # (1, 4H)
    b12 = slab[2:3, 0:NUM_CLASSES]                  # (1, 5)
    whh_t = whh_ref[...]                            # (H, 4H) bf16
    w12 = w12_ref[...]                              # (H, 5)  bf16

    h = jnp.zeros((batch, H), jnp.float32)
    c = jnp.zeros((batch, H), jnp.float32)

    # Fully-unrolled serial recurrence.  The input projection (x[t]*wih + bias)
    # is independent of h/c, so the scheduler overlaps it with the previous
    # step's matmul/EUP work.
    # TODO(synk): if a bundle dump shows the whh weight push repeated every
    # step, switch to explicit weight-stationary MXU driving
    # (pltpu.matmul_push_rhs / matmul_acc_lhs / matmul_pop).
    for t in range(seq):
        gates = (x_bt[:, t:t + 1] * wih + bg
                 + jnp.dot(h.astype(jnp.bfloat16), whh_t,
                           preferred_element_type=jnp.float32))   # (batch, 4H)
        # One EUP launch over all 4H lanes: g rows were pre-scaled by 2, so
        # tanh(g) == 2*sigmoid(2g) - 1 falls out of the same sigmoid.
        s = jax.nn.sigmoid(gates)
        i_gate = s[:, 0 * H:1 * H]
        f_gate = s[:, 1 * H:2 * H]
        o_gate = s[:, 2 * H:3 * H]
        g_gate = 2.0 * s[:, 3 * H:4 * H] - 1.0
        c = f_gate * c + i_gate * g_gate
        h = o_gate * jnp.tanh(c)

    # Net.forward uses hidden[1] == final cell state c_n; fc1∘fc2 folded.
    out = jnp.dot(c.astype(jnp.bfloat16), w12,
                  preferred_element_type=jnp.float32) + b12
    out_ref[...] = out.astype(out_ref.dtype)        # (batch, 5) masked store: OK


def init_params(key):
    """Deterministic synthetic parameters with PyTorch-default init ranges."""
    ks = jax.random.split(key, 8)
    k_lstm = 1.0 / math.sqrt(HIDDEN)
    k_fc1 = 1.0 / math.sqrt(HIDDEN)
    k_fc2 = 1.0 / math.sqrt(FC1)
    wih = jax.random.uniform(ks[0], (4 * HIDDEN, 1), jnp.float32, -k_lstm, k_lstm)
    whh = jax.random.uniform(ks[1], (4 * HIDDEN, HIDDEN), jnp.float32, -k_lstm, k_lstm)
    bih = jax.random.uniform(ks[2], (4 * HIDDEN,), jnp.float32, -k_lstm, k_lstm)
    bhh = jax.random.uniform(ks[3], (4 * HIDDEN,), jnp.float32, -k_lstm, k_lstm)
    w1 = jax.random.uniform(ks[4], (FC1, HIDDEN), jnp.float32, -k_fc1, k_fc1)
    b1 = jax.random.uniform(ks[5], (FC1,), jnp.float32, -k_fc1, k_fc1)
    w2 = jax.random.uniform(ks[6], (NUM_CLASSES, FC1), jnp.float32, -k_fc2, k_fc2)
    b2 = jax.random.uniform(ks[7], (NUM_CLASSES,), jnp.float32, -k_fc2, k_fc2)
    return (wih, whh, bih, bhh, w1, b1, w2, b2)


def _repack_scale_gates(w):
    """PyTorch LSTM gate rows [i,f,g,o] -> [i,f,o,g], with g rows scaled by 2
    so tanh(g) can be recovered as 2*sigmoid(2g)-1 from a single sigmoid."""
    i, f, g, o = jnp.split(w, 4, axis=0)
    return jnp.concatenate([i, f, o, 2.0 * g], axis=0)


def prepare_params(params):
    """One-time layout plumbing (repack / transpose / fold / cast), hoisted out
    of the per-call path so the forward is a single pallas_call."""
    wih, whh, bih, bhh, w1, b1, w2, b2 = params
    wih_row = _repack_scale_gates(wih).T                            # (1, 4H) f32
    bg_row = _repack_scale_gates((bih + bhh)[:, None]).T            # (1, 4H) f32
    whh_bf16 = _repack_scale_gates(whh).T.astype(jnp.bfloat16)      # (H, 4H) bf16
    # fc1 and fc2 have no activation between them -> exact constant fold.
    w12 = w1.T @ w2.T                                               # (H, 5)  f32
    b12 = b1 @ w2.T + b2                                            # (5,)    f32
    b12_row = jnp.zeros((1, 4 * HIDDEN), jnp.float32).at[0, :NUM_CLASSES].set(b12)
    slab = jnp.concatenate([wih_row, bg_row, b12_row], axis=0)      # (3, 4H) f32
    return slab, whh_bf16, w12.astype(jnp.bfloat16)


@jax.jit
def net_forward(x, slab, whh_bf16, w12_bf16):
    """x: (seq_len, batch) -> logits (batch, 5), matching PyTorch Net.forward."""
    seq, batch = x.shape
    vmem = pl.BlockSpec(memory_space=pltpu.MemorySpace.VMEM)
    return pl.pallas_call(
        net_kernel,
        out_shape=jax.ShapeDtypeStruct((batch, NUM_CLASSES), jnp.float32),
        in_specs=[vmem] * 4,
        out_specs=vmem,
    )(x.T.astype(jnp.float32), slab, whh_bf16, w12_bf16)


def net_forward_ref(x, params):
    """Pure-JAX f32 reference replicating PyTorch LSTM + Linear semantics
    (original [i, f, g, o] gate order, un-transposed weights, separate fcs)."""
    wih, whh, bih, bhh, w1, b1, w2, b2 = params
    seq, batch = x.shape
    H = HIDDEN
    h = jnp.zeros((batch, H), jnp.float32)
    c = jnp.zeros((batch, H), jnp.float32)
    b = bih + bhh
    for t in range(seq):
        x_t = x[t].astype(jnp.float32)                              # (batch,)
        gates = x_t[:, None] * wih[:, 0][None, :] + h @ whh.T + b   # (batch, 4H)
        i = jax.nn.sigmoid(gates[:, 0 * H:1 * H])
        f = jax.nn.sigmoid(gates[:, 1 * H:2 * H])
        g = jnp.tanh(gates[:, 2 * H:3 * H])
        o = jax.nn.sigmoid(gates[:, 3 * H:4 * H])
        c = f * c + i * g
        h = o * jnp.tanh(c)
    # Net.forward uses hidden[1] == c_n
    return (c @ w1.T + b1) @ w2.T + b2                              # (batch, 5)


if __name__ == "__main__":
    key = jax.random.PRNGKey(0)
    k_x, k_p = jax.random.split(key)

    SEQ, BATCH = 8, 2
    x = jax.random.normal(k_x, (SEQ, BATCH), jnp.float32)    # (seq_len, batch)
    params = init_params(k_p)
    prepped = prepare_params(params)                          # one-time plumbing

    out = jax.block_until_ready(net_forward(x, *prepped))     # (batch, 5)
    ref = jax.block_until_ready(net_forward_ref(x, params))

    assert out.shape == (BATCH, NUM_CLASSES), out.shape
    max_err = float(jnp.max(jnp.abs(out - ref)))
    # bf16 MXU operands with f32 accumulation over an 8-step recurrence.
    assert max_err < 2e-2, f"mismatch vs reference: {max_err}"
    print("KERNEL_OK")
</pallas_src>

<mosaic_0001>
module attributes {stable_mosaic.version = 11 : i64} {
  func.func @net_kernel(%arg0: memref<2x8xf32, #tpu.memory_space<vmem>>, %arg1: memref<3x256xf32, #tpu.memory_space<vmem>>, %arg2: memref<64x256xbf16, #tpu.memory_space<vmem>>, %arg3: memref<64x5xbf16, #tpu.memory_space<vmem>>, %arg4: memref<2x5xf32, #tpu.memory_space<vmem>>) attributes {dimension_semantics = [], scalar_prefetch = 0 : i64, scratch_operands = 0 : i64, tpu.core_type = #tpu.core_type<tc>} {
    %c0 = arith.constant 0 : index
    %c0_0 = arith.constant 0 : index
    %0 = vector.load %arg0[%c0, %c0_0] : memref<2x8xf32, #tpu.memory_space<vmem>>, vector<2x8xf32>
    %c0_1 = arith.constant 0 : index
    %c0_2 = arith.constant 0 : index
    %1 = vector.load %arg1[%c0_1, %c0_2] : memref<3x256xf32, #tpu.memory_space<vmem>>, vector<3x256xf32>
    %2 = vector.extract_strided_slice %1 {offsets = [0, 0], sizes = [1, 256], strides = [1, 1]} : vector<3x256xf32> to vector<1x256xf32>
    %3 = vector.extract_strided_slice %1 {offsets = [1, 0], sizes = [1, 256], strides = [1, 1]} : vector<3x256xf32> to vector<1x256xf32>
    %4 = vector.extract_strided_slice %1 {offsets = [2, 0], sizes = [1, 5], strides = [1, 1]} : vector<3x256xf32> to vector<1x5xf32>
    %c0_3 = arith.constant 0 : index
    %c0_4 = arith.constant 0 : index
    %5 = vector.load %arg2[%c0_3, %c0_4] : memref<64x256xbf16, #tpu.memory_space<vmem>>, vector<64x256xbf16>
    %c0_5 = arith.constant 0 : index
    %c0_6 = arith.constant 0 : index
    %6 = vector.load %arg3[%c0_5, %c0_6] : memref<64x5xbf16, #tpu.memory_space<vmem>>, vector<64x5xbf16>
    %cst = arith.constant 0.000000e+00 : f32
    %7 = vector.broadcast %cst : f32 to vector<2x64xf32>
    %cst_7 = arith.constant 0.000000e+00 : f32
    %8 = vector.broadcast %cst_7 : f32 to vector<2x64xf32>
    %9 = vector.extract_strided_slice %0 {offsets = [0, 0], sizes = [2, 1], strides = [1, 1]} : vector<2x8xf32> to vector<2x1xf32>
    %10 = vector.broadcast %9 : vector<2x1xf32> to vector<2x256xf32>
    %11 = vector.broadcast %2 : vector<1x256xf32> to vector<2x256xf32>
    %12 = arith.mulf %10, %11 : vector<2x256xf32>
    %13 = vector.broadcast %3 : vector<1x256xf32> to vector<2x256xf32>
    %14 = arith.addf %12, %13 : vector<2x256xf32>
    %15 = arith.truncf %7 : vector<2x64xf32> to vector<2x64xbf16>
    %cst_8 = arith.constant dense<0.000000e+00> : vector<2x256xf32>
    %16 = tpu.matmul %15, %5, %cst_8 {dimension_numbers = #tpu.dot_dimension_numbers<[1], [0], [0], [1], [0, 0, 1, 1], [], []>} : vector<2x64xbf16>, vector<64x256xbf16>, vector<2x256xf32> -> vector<2x256xf32>
    %17 = arith.addf %14, %16 : vector<2x256xf32>
    %18 = arith.negf %17 : vector<2x256xf32>
    %19 = math.exp %18 : vector<2x256xf32>
    %cst_9 = arith.constant 1.000000e+00 : f32
    %20 = vector.broadcast %cst_9 : f32 to vector<2x256xf32>
    %21 = arith.addf %20, %19 : vector<2x256xf32>
    %22 = arith.divf %20, %21 : vector<2x256xf32>
    %23 = vector.extract_strided_slice %22 {offsets = [0, 0], sizes = [2, 64], strides = [1, 1]} : vector<2x256xf32> to vector<2x64xf32>
    %24 = vector.extract_strided_slice %22 {offsets = [0, 64], sizes = [2, 64], strides = [1, 1]} : vector<2x256xf32> to vector<2x64xf32>
    %25 = vector.extract_strided_slice %22 {offsets = [0, 128], sizes = [2, 64], strides = [1, 1]} : vector<2x256xf32> to vector<2x64xf32>
    %26 = vector.extract_strided_slice %22 {offsets = [0, 192], sizes = [2, 64], strides = [1, 1]} : vector<2x256xf32> to vector<2x64xf32>
    %cst_10 = arith.constant 2.000000e+00 : f32
    %27 = vector.broadcast %cst_10 : f32 to vector<2x64xf32>
    %28 = arith.mulf %27, %26 : vector<2x64xf32>
    %cst_11 = arith.constant 1.000000e+00 : f32
    %29 = vector.broadcast %cst_11 : f32 to vector<2x64xf32>
    %30 = arith.subf %28, %29 : vector<2x64xf32>
    %31 = arith.mulf %24, %8 : vector<2x64xf32>
    %32 = arith.mulf %23, %30 : vector<2x64xf32>
    %33 = arith.addf %31, %32 : vector<2x64xf32>
    %34 = math.tanh %33 : vector<2x64xf32>
    %35 = arith.mulf %25, %34 : vector<2x64xf32>
    %36 = vector.extract_strided_slice %0 {offsets = [0, 1], sizes = [2, 1], strides = [1, 1]} : vector<2x8xf32> to vector<2x1xf32>
    %37 = vector.broadcast %36 : vector<2x1xf32> to vector<2x256xf32>
    %38 = vector.broadcast %2 : vector<1x256xf32> to vector<2x256xf32>
    %39 = arith.mulf %37, %38 : vector<2x256xf32>
    %40 = vector.broadcast %3 : vector<1x256xf32> to vector<2x256xf32>
    %41 = arith.addf %39, %40 : vector<2x256xf32>
    %42 = arith.truncf %35 : vector<2x64xf32> to vector<2x64xbf16>
    %cst_12 = arith.constant dense<0.000000e+00> : vector<2x256xf32>
    %43 = tpu.matmul %42, %5, %cst_12 {dimension_numbers = #tpu.dot_dimension_numbers<[1], [0], [0], [1], [0, 0, 1, 1], [], []>} : vector<2x64xbf16>, vector<64x256xbf16>, vector<2x256xf32> -> vector<2x256xf32>
    %44 = arith.addf %41, %43 : vector<2x256xf32>
    %45 = arith.negf %44 : vector<2x256xf32>
    %46 = math.exp %45 : vector<2x256xf32>
    %cst_13 = arith.constant 1.000000e+00 : f32
    %47 = vector.broadcast %cst_13 : f32 to vector<2x256xf32>
    %48 = arith.addf %47, %46 : vector<2x256xf32>
    %49 = arith.divf %47, %48 : vector<2x256xf32>
    %50 = vector.extract_strided_slice %49 {offsets = [0, 0], sizes = [2, 64], strides = [1, 1]} : vector<2x256xf32> to vector<2x64xf32>
    %51 = vector.extract_strided_slice %49 {offsets = [0, 64], sizes = [2, 64], strides = [1, 1]} : vector<2x256xf32> to vector<2x64xf32>
    %52 = vector.extract_strided_slice %49 {offsets = [0, 128], sizes = [2, 64], strides = [1, 1]} : vector<2x256xf32> to vector<2x64xf32>
    %53 = vector.extract_strided_slice %49 {offsets = [0, 192], sizes = [2, 64], strides = [1, 1]} : vector<2x256xf32> to vector<2x64xf32>
    %cst_14 = arith.constant 2.000000e+00 : f32
    %54 = vector.broadcast %cst_14 : f32 to vector<2x64xf32>
    %55 = arith.mulf %54, %53 : vector<2x64xf32>
    %cst_15 = arith.constant 1.000000e+00 : f32
    %56 = vector.broadcast %cst_15 : f32 to vector<2x64xf32>
    %57 = arith.subf %55, %56 : vector<2x64xf32>
    %58 = arith.mulf %51, %33 : vector<2x64xf32>
    %59 = arith.mulf %50, %57 : vector<2x64xf32>
    %60 = arith.addf %58, %59 : vector<2x64xf32>
    %61 = math.tanh %60 : vector<2x64xf32>
    %62 = arith.mulf %52, %61 : vector<2x64xf32>
    %63 = vector.extract_strided_slice %0 {offsets = [0, 2], sizes = [2, 1], strides = [1, 1]} : vector<2x8xf32> to vector<2x1xf32>
    %64 = vector.broadcast %63 : vector<2x1xf32> to vector<2x256xf32>
    %65 = vector.broadcast %2 : vector<1x256xf32> to vector<2x256xf32>
    %66 = arith.mulf %64, %65 : vector<2x256xf32>
    %67 = vector.broadcast %3 : vector<1x256xf32> to vector<2x256xf32>
    %68 = arith.addf %66, %67 : vector<2x256xf32>
    %69 = arith.truncf %62 : vector<2x64xf32> to vector<2x64xbf16>
    %cst_16 = arith.constant dense<0.000000e+00> : vector<2x256xf32>
    %70 = tpu.matmul %69, %5, %cst_16 {dimension_numbers = #tpu.dot_dimension_numbers<[1], [0], [0], [1], [0, 0, 1, 1], [], []>} : vector<2x64xbf16>, vector<64x256xbf16>, vector<2x256xf32> -> vector<2x256xf32>
    %71 = arith.addf %68, %70 : vector<2x256xf32>
    %72 = arith.negf %71 : vector<2x256xf32>
    %73 = math.exp %72 : vector<2x256xf32>
    %cst_17 = arith.constant 1.000000e+00 : f32
    %74 = vector.broadcast %cst_17 : f32 to vector<2x256xf32>
    %75 = arith.addf %74, %73 : vector<2x256xf32>
    %76 = arith.divf %74, %75 : vector<2x256xf32>
    %77 = vector.extract_strided_slice %76 {offsets = [0, 0], sizes = [2, 64], strides = [1, 1]} : vector<2x256xf32> to vector<2x64xf32>
    %78 = vector.extract_strided_slice %76 {offsets = [0, 64], sizes = [2, 64], strides = [1, 1]} : vector<2x256xf32> to vector<2x64xf32>
    %79 = vector.extract_strided_slice %76 {offsets = [0, 128], sizes = [2, 64], strides = [1, 1]} : vector<2x256xf32> to vector<2x64xf32>
    %80 = vector.extract_strided_slice %76 {offsets = [0, 192], sizes = [2, 64], strides = [1, 1]} : vector<2x256xf32> to vector<2x64xf32>
    %cst_18 = arith.constant 2.000000e+00 : f32
    %81 = vector.broadcast %cst_18 : f32 to vector<2x64xf32>
    %82 = arith.mulf %81, %80 : vector<2x64xf32>
    %cst_19 = arith.constant 1.000000e+00 : f32
    %83 = vector.broadcast %cst_19 : f32 to vector<2x64xf32>
    %84 = arith.subf %82, %83 : vector<2x64xf32>
    %85 = arith.mulf %78, %60 : vector<2x64xf32>
    %86 = arith.mulf %77, %84 : vector<2x64xf32>
    %87 = arith.addf %85, %86 : vector<2x64xf32>
    %88 = math.tanh %87 : vector<2x64xf32>
    %89 = arith.mulf %79, %88 : vector<2x64xf32>
    %90 = vector.extract_strided_slice %0 {offsets = [0, 3], sizes = [2, 1], strides = [1, 1]} : vector<2x8xf32> to vector<2x1xf32>
    %91 = vector.broadcast %90 : vector<2x1xf32> to vector<2x256xf32>
    %92 = vector.broadcast %2 : vector<1x256xf32> to vector<2x256xf32>
    %93 = arith.mulf %91, %92 : vector<2x256xf32>
    %94 = vector.broadcast %3 : vector<1x256xf32> to vector<2x256xf32>
    %95 = arith.addf %93, %94 : vector<2x256xf32>
    %96 = arith.truncf %89 : vector<2x64xf32> to vector<2x64xbf16>
    %cst_20 = arith.constant dense<0.000000e+00> : vector<2x256xf32>
    %97 = tpu.matmul %96, %5, %cst_20 {dimension_numbers = #tpu.dot_dimension_numbers<[1], [0], [0], [1], [0, 0, 1, 1], [], []>} : vector<2x64xbf16>, vector<64x256xbf16>, vector<2x256xf32> -> vector<2x256xf32>
    %98 = arith.addf %95, %97 : vector<2x256xf32>
    %99 = arith.negf %98 : vector<2x256xf32>
    %100 = math.exp %99 : vector<2x256xf32>
    %cst_21 = arith.constant 1.000000e+00 : f32
    %101 = vector.broadcast %cst_21 : f32 to vector<2x256xf32>
    %102 = arith.addf %101, %100 : vector<2x256xf32>
    %103 = arith.divf %101, %102 : vector<2x256xf32>
    %104 = vector.extract_strided_slice %103 {offsets = [0, 0], sizes = [2, 64], strides = [1, 1]} : vector<2x256xf32> to vector<2x64xf32>
    %105 = vector.extract_strided_slice %103 {offsets = [0, 64], sizes = [2, 64], strides = [1, 1]} : vector<2x256xf32> to vector<2x64xf32>
    %106 = vector.extract_strided_slice %103 {offsets = [0, 128], sizes = [2, 64], strides = [1, 1]} : vector<2x256xf32> to vector<2x64xf32>
    %107 = vector.extract_strided_slice %103 {offsets = [0, 192], sizes = [2, 64], strides = [1, 1]} : vector<2x256xf32> to vector<2x64xf32>
    %cst_22 = arith.constant 2.000000e+00 : f32
    %108 = vector.broadcast %cst_22 : f32 to vector<2x64xf32>
    %109 = arith.mulf %108, %107 : vector<2x64xf32>
    %cst_23 = arith.constant 1.000000e+00 : f32
    %110 = vector.broadcast %cst_23 : f32 to vector<2x64xf32>
    %111 = arith.subf %109, %110 : vector<2x64xf32>
    %112 = arith.mulf %105, %87 : vector<2x64xf32>
    %113 = arith.mulf %104, %111 : vector<2x64xf32>
    %114 = arith.addf %112, %113 : vector<2x64xf32>
    %115 = math.tanh %114 : vector<2x64xf32>
    %116 = arith.mulf %106, %115 : vector<2x64xf32>
    %117 = vector.extract_strided_slice %0 {offsets = [0, 4], sizes = [2, 1], strides = [1, 1]} : vector<2x8xf32> to vector<2x1xf32>
    %118 = vector.broadcast %117 : vector<2x1xf32> to vector<2x256xf32>
    %119 = vector.broadcast %2 : vector<1x256xf32> to vector<2x256xf32>
    %120 = arith.mulf %118, %119 : vector<2x256xf32>
    %121 = vector.broadcast %3 : vector<1x256xf32> to vector<2x256xf32>
    %122 = arith.addf %120, %121 : vector<2x256xf32>
    %123 = arith.truncf %116 : vector<2x64xf32> to vector<2x64xbf16>
    %cst_24 = arith.constant dense<0.000000e+00> : vector<2x256xf32>
    %124 = tpu.matmul %123, %5, %cst_24 {dimension_numbers = #tpu.dot_dimension_numbers<[1], [0], [0], [1], [0, 0, 1, 1], [], []>} : vector<2x64xbf16>, vector<64x256xbf16>, vector<2x256xf32> -> vector<2x256xf32>
    %125 = arith.addf %122, %124 : vector<2x256xf32>
    %126 = arith.negf %125 : vector<2x256xf32>
    %127 = math.exp %126 : vector<2x256xf32>
    %cst_25 = arith.constant 1.000000e+00 : f32
    %128 = vector.broadcast %cst_25 : f32 to vector<2x256xf32>
    %129 = arith.addf %128, %127 : vector<2x256xf32>
    %130 = arith.divf %128, %129 : vector<2x256xf32>
    %131 = vector.extract_strided_slice %130 {offsets = [0, 0], sizes = [2, 64], strides = [1, 1]} : vector<2x256xf32> to vector<2x64xf32>
    %132 = vector.extract_strided_slice %130 {offsets = [0, 64], sizes = [2, 64], strides = [1, 1]} : vector<2x256xf32> to vector<2x64xf32>
    %133 = vector.extract_strided_slice %130 {offsets = [0, 128], sizes = [2, 64], strides = [1, 1]} : vector<2x256xf32> to vector<2x64xf32>
    %134 = vector.extract_strided_slice %130 {offsets = [0, 192], sizes = [2, 64], strides = [1, 1]} : vector<2x256xf32> to vector<2x64xf32>
    %cst_26 = arith.constant 2.000000e+00 : f32
    %135 = vector.broadcast %cst_26 : f32 to vector<2x64xf32>
    %136 = arith.mulf %135, %134 : vector<2x64xf32>
    %cst_27 = arith.constant 1.000000e+00 : f32
    %137 = vector.broadcast %cst_27 : f32 to vector<2x64xf32>
    %138 = arith.subf %136, %137 : vector<2x64xf32>
    %139 = arith.mulf %132, %114 : vector<2x64xf32>
    %140 = arith.mulf %131, %138 : vector<2x64xf32>
    %141 = arith.addf %139, %140 : vector<2x64xf32>
    %142 = math.tanh %141 : vector<2x64xf32>
    %143 = arith.mulf %133, %142 : vector<2x64xf32>
    %144 = vector.extract_strided_slice %0 {offsets = [0, 5], sizes = [2, 1], strides = [1, 1]} : vector<2x8xf32> to vector<2x1xf32>
    %145 = vector.broadcast %144 : vector<2x1xf32> to vector<2x256xf32>
    %146 = vector.broadcast %2 : vector<1x256xf32> to vector<2x256xf32>
    %147 = arith.mulf %145, %146 : vector<2x256xf32>
    %148 = vector.broadcast %3 : vector<1x256xf32> to vector<2x256xf32>
    %149 = arith.addf %147, %148 : vector<2x256xf32>
    %150 = arith.truncf %143 : vector<2x64xf32> to vector<2x64xbf16>
    %cst_28 = arith.constant dense<0.000000e+00> : vector<2x256xf32>
    %151 = tpu.matmul %150, %5, %cst_28 {dimension_numbers = #tpu.dot_dimension_numbers<[1], [0], [0], [1], [0, 0, 1, 1], [], []>} : vector<2x64xbf16>, vector<64x256xbf16>, vector<2x256xf32> -> vector<2x256xf32>
    %152 = arith.addf %149, %151 : vector<2x256xf32>
    %153 = arith.negf %152 : vector<2x256xf32>
    %154 = math.exp %153 : vector<2x256xf32>
    %cst_29 = arith.constant 1.000000e+00 : f32
    %155 = vector.broadcast %cst_29 : f32 to vector<2x256xf32>
    %156 = arith.addf %155, %154 : vector<2x256xf32>
    %157 = arith.divf %155, %156 : vector<2x256xf32>
    %158 = vector.extract_strided_slice %157 {offsets = [0, 0], sizes = [2, 64], strides = [1, 1]} : vector<2x256xf32> to vector<2x64xf32>
    %159 = vector.extract_strided_slice %157 {offsets = [0, 64], sizes = [2, 64], strides = [1, 1]} : vector<2x256xf32> to vector<2x64xf32>
    %160 = vector.extract_strided_slice %157 {offsets = [0, 128], sizes = [2, 64], strides = [1, 1]} : vector<2x256xf32> to vector<2x64xf32>
    %161 = vector.extract_strided_slice %157 {offsets = [0, 192], sizes = [2, 64], strides = [1, 1]} : vector<2x256xf32> to vector<2x64xf32>
    %cst_30 = arith.constant 2.000000e+00 : f32
    %162 = vector.broadcast %cst_30 : f32 to vector<2x64xf32>
    %163 = arith.mulf %162, %161 : vector<2x64xf32>
    %cst_31 = arith.constant 1.000000e+00 : f32
    %164 = vector.broadcast %cst_31 : f32 to vector<2x64xf32>
    %165 = arith.subf %163, %164 : vector<2x64xf32>
    %166 = arith.mulf %159, %141 : vector<2x64xf32>
    %167 = arith.mulf %158, %165 : vector<2x64xf32>
    %168 = arith.addf %166, %167 : vector<2x64xf32>
    %169 = math.tanh %168 : vector<2x64xf32>
    %170 = arith.mulf %160, %169 : vector<2x64xf32>
    %171 = vector.extract_strided_slice %0 {offsets = [0, 6], sizes = [2, 1], strides = [1, 1]} : vector<2x8xf32> to vector<2x1xf32>
    %172 = vector.broadcast %171 : vector<2x1xf32> to vector<2x256xf32>
    %173 = vector.broadcast %2 : vector<1x256xf32> to vector<2x256xf32>
    %174 = arith.mulf %172, %173 : vector<2x256xf32>
    %175 = vector.broadcast %3 : vector<1x256xf32> to vector<2x256xf32>
    %176 = arith.addf %174, %175 : vector<2x256xf32>
    %177 = arith.truncf %170 : vector<2x64xf32> to vector<2x64xbf16>
    %cst_32 = arith.constant dense<0.000000e+00> : vector<2x256xf32>
    %178 = tpu.matmul %177, %5, %cst_32 {dimension_numbers = #tpu.dot_dimension_numbers<[1], [0], [0], [1], [0, 0, 1, 1], [], []>} : vector<2x64xbf16>, vector<64x256xbf16>, vector<2x256xf32> -> vector<2x256xf32>
    %179 = arith.addf %176, %178 : vector<2x256xf32>
    %180 = arith.negf %179 : vector<2x256xf32>
    %181 = math.exp %180 : vector<2x256xf32>
    %cst_33 = arith.constant 1.000000e+00 : f32
    %182 = vector.broadcast %cst_33 : f32 to vector<2x256xf32>
    %183 = arith.addf %182, %181 : vector<2x256xf32>
    %184 = arith.divf %182, %183 : vector<2x256xf32>
    %185 = vector.extract_strided_slice %184 {offsets = [0, 0], sizes = [2, 64], strides = [1, 1]} : vector<2x256xf32> to vector<2x64xf32>
    %186 = vector.extract_strided_slice %184 {offsets = [0, 64], sizes = [2, 64], strides = [1, 1]} : vector<2x256xf32> to vector<2x64xf32>
    %187 = vector.extract_strided_slice %184 {offsets = [0, 128], sizes = [2, 64], strides = [1, 1]} : vector<2x256xf32> to vector<2x64xf32>
    %188 = vector.extract_strided_slice %184 {offsets = [0, 192], sizes = [2, 64], strides = [1, 1]} : vector<2x256xf32> to vector<2x64xf32>
    %cst_34 = arith.constant 2.000000e+00 : f32
    %189 = vector.broadcast %cst_34 : f32 to vector<2x64xf32>
    %190 = arith.mulf %189, %188 : vector<2x64xf32>
    %cst_35 = arith.constant 1.000000e+00 : f32
    %191 = vector.broadcast %cst_35 : f32 to vector<2x64xf32>
    %192 = arith.subf %190, %191 : vector<2x64xf32>
    %193 = arith.mulf %186, %168 : vector<2x64xf32>
    %194 = arith.mulf %185, %192 : vector<2x64xf32>
    %195 = arith.addf %193, %194 : vector<2x64xf32>
    %196 = math.tanh %195 : vector<2x64xf32>
    %197 = arith.mulf %187, %196 : vector<2x64xf32>
    %198 = vector.extract_strided_slice %0 {offsets = [0, 7], sizes = [2, 1], strides = [1, 1]} : vector<2x8xf32> to vector<2x1xf32>
    %199 = vector.broadcast %198 : vector<2x1xf32> to vector<2x256xf32>
    %200 = vector.broadcast %2 : vector<1x256xf32> to vector<2x256xf32>
    %201 = arith.mulf %199, %200 : vector<2x256xf32>
    %202 = vector.broadcast %3 : vector<1x256xf32> to vector<2x256xf32>
    %203 = arith.addf %201, %202 : vector<2x256xf32>
    %204 = arith.truncf %197 : vector<2x64xf32> to vector<2x64xbf16>
    %cst_36 = arith.constant dense<0.000000e+00> : vector<2x256xf32>
    %205 = tpu.matmul %204, %5, %cst_36 {dimension_numbers = #tpu.dot_dimension_numbers<[1], [0], [0], [1], [0, 0, 1, 1], [], []>} : vector<2x64xbf16>, vector<64x256xbf16>, vector<2x256xf32> -> vector<2x256xf32>
    %206 = arith.addf %203, %205 : vector<2x256xf32>
    %207 = arith.negf %206 : vector<2x256xf32>
    %208 = math.exp %207 : vector<2x256xf32>
    %cst_37 = arith.constant 1.000000e+00 : f32
    %209 = vector.broadcast %cst_37 : f32 to vector<2x256xf32>
    %210 = arith.addf %209, %208 : vector<2x256xf32>
    %211 = arith.divf %209, %210 : vector<2x256xf32>
    %212 = vector.extract_strided_slice %211 {offsets = [0, 0], sizes = [2, 64], strides = [1, 1]} : vector<2x256xf32> to vector<2x64xf32>
    %213 = vector.extract_strided_slice %211 {offsets = [0, 64], sizes = [2, 64], strides = [1, 1]} : vector<2x256xf32> to vector<2x64xf32>
    %214 = vector.extract_strided_slice %211 {offsets = [0, 192], sizes = [2, 64], strides = [1, 1]} : vector<2x256xf32> to vector<2x64xf32>
    %cst_38 = arith.constant 2.000000e+00 : f32
    %215 = vector.broadcast %cst_38 : f32 to vector<2x64xf32>
    %216 = arith.mulf %215, %214 : vector<2x64xf32>
    %cst_39 = arith.constant 1.000000e+00 : f32
    %217 = vector.broadcast %cst_39 : f32 to vector<2x64xf32>
    %218 = arith.subf %216, %217 : vector<2x64xf32>
    %219 = arith.mulf %213, %195 : vector<2x64xf32>
    %220 = arith.mulf %212, %218 : vector<2x64xf32>
    %221 = arith.addf %219, %220 : vector<2x64xf32>
    %222 = arith.truncf %221 : vector<2x64xf32> to vector<2x64xbf16>
    %cst_40 = arith.constant dense<0.000000e+00> : vector<2x5xf32>
    %223 = tpu.matmul %222, %6, %cst_40 {dimension_numbers = #tpu.dot_dimension_numbers<[1], [0], [0], [1], [0, 0, 1, 1], [], []>} : vector<2x64xbf16>, vector<64x5xbf16>, vector<2x5xf32> -> vector<2x5xf32>
    %224 = vector.broadcast %4 : vector<1x5xf32> to vector<2x5xf32>
    %225 = arith.addf %223, %224 : vector<2x5xf32>
    %c0_41 = arith.constant 0 : index
    %c0_42 = arith.constant 0 : index
    %226 = vector.load %arg4[%c0_41, %c0_42] : memref<2x5xf32, #tpu.memory_space<vmem>>, vector<2x5xf32>
    tpu.vector_store %arg4[%c0_41, %c0_42], %225 {strides = array<i32>} : memref<2x5xf32, #tpu.memory_space<vmem>>, vector<2x5xf32>,
    return
  }
}

</mosaic_0001>

<llo_original>
// kernel: net_forward.1
$region0: #{net_forward.1}
  #allocation0 [shape = 'u32[]', space=smem, size = 0x4, offset = 0x4, fixed_abs, tag = 'smem constant byte address 0x4 - core index']
  #allocation1 [shape = 'u32[144,128]{1,0:T(1,128)}', space=vmem, size = 0x12000, scoped, tag = 'internal scratch']
  %s0 = inlined_call_operand.vmem [shape: f32[2,8], index: 0, kind: input, shape index: {}]
  %s1 = inlined_call_operand.vmem [shape: f32[3,256], index: 1, kind: input, shape index: {}]
  %s2 = inlined_call_operand.hbm [shape: bf16[64,256], index: 2, kind: input, shape index: {}]
  %s3 = inlined_call_operand.vmem [shape: bf16[64,5], index: 3, kind: input, shape index: {}]
  %s4 = inlined_call_operand.hbm [shape: f32[2,5], index: 4, kind: output, shape index: {}]
  %s5 = sld [smem:[#allocation0]]
  $region30: #{net_forward.1} parent=0
    _
  %s7 = ssub.s32 1, %s5
  %s8 = scalar_select 0, %s7, %s5
  $region1: #{net_forward.1} parent=0
    #allocation2 [shape = 'u8[32768]{0}', space=vmem, size = 0x8000, scoped, tag = 'input window, operand 2, single buffered']
    #allocation3 [shape = 's32[1]{0}', space=sflag, size = 0x4, scoped, tag = 'scoped memory for net_forward.1']
    #allocation4 [shape = 's32[1]{0}', space=sflag, size = 0x4, scoped, tag = 'scoped memory for net_forward.1']
    #allocation5 [shape = 'u8[1024]{0}', space=vmem, size = 0x400, scoped, tag = 'output window, operand 0, single buffered']
    %9 = vsyncpa [#allocation3], 0
    %10 = vsyncpa [#allocation4], 0
    // Predicated region
    $region2: #{net_forward.1} parent=1 // pred_check
      _
    $region3: #{net_forward.1} parent=1 // pred_check_branch
      %12 = sbr.rel (0) target = $region5
    $region4: #{net_forward.1} parent=1 // pred_region
      _
    $region5: #{net_forward.1} parent=1 // pred_fallthru
      _
    // Predicated region
    $region6: #{net_forward.1} parent=1 // pred_check
      _
    $region7: #{net_forward.1} parent=1 // pred_check_branch
      %14 = sbr.rel (0) target = $region9
    $region8: #{net_forward.1} parent=1 // pred_region
      _
    $region9: #{net_forward.1} parent=1 // pred_fallthru
      _
    // Predicated region
    $region10: #{net_forward.1} parent=1 // pred_check
      _
    $region11: #{net_forward.1} parent=1 // pred_check_branch
      %16 = sbr.rel (0) target = $region13
    $region12: #{net_forward.1} parent=1 // pred_region
      %s18 = ssub.s32 1024, 1024
      %19 = vsyncadd [#allocation3], %s18
      %s20 = sshll.u32 [#allocation2], 4
      %s21 = int_to_ptr.vmem [resolvable:$true] %s20
      %26 = dma.hbm_to_vmem [thread:$0]  %s2, 1024, %s21, [#allocation3], 128, 128, 8
    $region13: #{net_forward.1} parent=1 // pred_fallthru
      _
    // Predicated region
    $region14: #{net_forward.1} parent=1 // pred_check
      _
    $region15: #{net_forward.1} parent=1 // pred_check_branch
      %28 = sbr.rel (0) target = $region17
    $region16: #{net_forward.1} parent=1 // pred_region
      _
    $region17: #{net_forward.1} parent=1 // pred_fallthru
      _
    // Predicated region
    $region18: #{net_forward.1} parent=1 // pred_check
      _
    $region19: #{net_forward.1} parent=1 // pred_check_branch
      %30 = sbr.rel (0) target = $region21
    $region20: #{net_forward.1} parent=1 // pred_region
      %31 = dma.done [#allocation3], 1024
    $region21: #{net_forward.1} parent=1 // pred_fallthru
      _
    %v33 = vld [vmem:[%s0] sm:$0x3]
    %v34 = vld [vmem:[%s1] sm:$0x77]
    %v35 = vld [vmem:[#allocation2] sm:$0xff]
    %v36 = vld [vmem:[#allocation2 + $0x8] sm:$0xff]
    %v37 = vld [vmem:[#allocation2 + $0x10] sm:$0xff]
    %v38 = vld [vmem:[#allocation2 + $0x18] sm:$0xff]
    %v39 = vld [vmem:[#allocation2 + $0x20] sm:$0xff]
    %v40 = vld [vmem:[#allocation2 + $0x28] sm:$0xff]
    %v41 = vld [vmem:[#allocation2 + $0x30] sm:$0xff]
    %v42 = vld [vmem:[#allocation2 + $0x38] sm:$0xff]
    %v43 = vld [vmem:[%s3] sm:$0xf]
    %v44 = vld [vmem:[%s3 + $0x4] sm:$0xf]
    %v45 = vld [vmem:[%s3 + $0x8] sm:$0xf]
    %v46 = vld [vmem:[%s3 + $0xc] sm:$0xf]
    %v47 = vld [vmem:[%s3 + $0x10] sm:$0xf]
    %v48 = vld [vmem:[%s3 + $0x14] sm:$0xf]
    %v49 = vld [vmem:[%s3 + $0x18] sm:$0xf]
    %v50 = vld [vmem:[%s3 + $0x1c] sm:$0xf]
    %52 = vset.pattern.permute.xlu0 0
    %53 = vperm.xlu0 %52, %v33
    %v54 = vpop.permute.xlu0 %53
    %v57 = vlaneseq
    %v58 = vshrl.u32 %v57, 7
    %v59 = vsub.s32 0, %v58
    %v60 = vrot.slane %v34, %v59
    %v61 = vlaneseq
    %v62 = vshrl.u32 %v61, 7
    %v63 = vsub.s32 4, %v62
    %v64 = vrot.slane %v34, %v63
    %v67 = vlaneseq
    %v68 = vshrl.u32 %v67, 7
    %v69 = vsub.s32 0, %v68
    %v70 = vrot.slane %v60, %v69
    %v71 = vlaneseq
    %v72 = vshrl.u32 %v71, 7
    %v73 = vsub.s32 0, %v72
    %v74 = vrot.slane %v64, %v73
    %v75 = vmul.f32 %v54, %v70
    %v76 = vmul.f32 %v54, %v74
    %v77 = vlaneseq
    %v78 = vshrl.u32 %v77, 7
    %v79 = vsub.s32 1, %v78
    %v80 = vrot.slane %v34, %v79
    %v81 = vlaneseq
    %v82 = vshrl.u32 %v81, 7
    %v83 = vsub.s32 5, %v82
    %v84 = vrot.slane %v34, %v83
    %v87 = vlaneseq
    %v88 = vshrl.u32 %v87, 7
    %v89 = vsub.s32 1, %v88
    %v90 = vrot.slane %v80, %v89
    %v91 = vlaneseq
    %v92 = vshrl.u32 %v91, 7
    %v93 = vsub.s32 1, %v92
    %v94 = vrot.slane %v84, %v93
    %v95 = vadd.f32 %v75, %v90
    %v96 = vadd.f32 %v76, %v94
    %v105 = vunpack.c.l.b16 %v35
    %v106 = vunpack.c.h.b16 %v35
    %v107 = vunpack.c.l.b16 %v36
    %v108 = vunpack.c.h.b16 %v36
    %v109 = vunpack.c.l.b16 %v37
    %v110 = vunpack.c.h.b16 %v37
    %v111 = vunpack.c.l.b16 %v38
    %v112 = vunpack.c.h.b16 %v38
    %v113 = vunpack.c.l.b16 %v39
    %v114 = vunpack.c.h.b16 %v39
    %v115 = vunpack.c.l.b16 %v40
    %v116 = vunpack.c.h.b16 %v40
    %v117 = vunpack.c.l.b16 %v41
    %v118 = vunpack.c.h.b16 %v41
    %v119 = vunpack.c.l.b16 %v42
    %v120 = vunpack.c.h.b16 %v42
    %v121 = vpack.c.b16 %v107, %v105
    %v122 = vpack.c.b16 %v108, %v106
    %v123 = vpack.c.b16 %v111, %v109
    %v124 = vpack.c.b16 %v112, %v110
    %v125 = vpack.c.b16 %v115, %v113
    %v126 = vpack.c.b16 %v116, %v114
    %v127 = vpack.c.b16 %v119, %v117
    %v128 = vpack.c.b16 %v120, %v118
    %vm137 = vcmask 523264
    %v139 = vsel %vm137, 0, 0
    %141 = vmatprep.subr.bf16.mxu0 %v122
    %142 = vmatpush1.bf16.msra.mxu0 %v121
    %143 = vmatprep.subr.bf16.mxu0 %v124
    %144 = vmatpush1.bf16.msra.mxu0 %v123
    %145 = vmatprep.subr.bf16.mxu0 %v126
    %146 = vmatpush1.bf16.msra.mxu0 %v125
    %147 = vmatprep.subr.bf16.mxu0 %v128
    %148 = vmatpush1.bf16.msra.mxu0 %v127
    %149 = vmatprep.subr.bf16.mxu0 0
    %150 = vmatpush1.bf16.msra.mxu0 0
    %151 = vmatprep.subr.bf16.mxu0 0
    %152 = vmatpush1.bf16.msra.mxu0 0
    %153 = vmatprep.subr.bf16.mxu0 0
    %154 = vmatpush1.bf16.msra.mxu0 0
    %155 = vmatprep.subr.bf16.mxu0 0
    %156 = vmatpush1.bf16.msra.mxu0 0
    %157 = vmatprep.subr.bf16.mxu0 0
    %158 = vmatpush1.bf16.msra.mxu0 0
    %159 = vmatprep.subr.bf16.mxu0 0
    %160 = vmatpush1.bf16.msra.mxu0 0
    %161 = vmatprep.subr.bf16.mxu0 0
    %162 = vmatpush1.bf16.msra.mxu0 0
    %163 = vmatprep.subr.bf16.mxu0 0
    %164 = vmatpush1.bf16.msra.mxu0 0
    %165 = vmatprep.subr.bf16.mxu0 0
    %166 = vmatpush1.bf16.msra.mxu0 0
    %167 = vmatprep.subr.bf16.mxu0 0
    %168 = vmatpush1.bf16.msra.mxu0 0
    %169 = vmatprep.subr.bf16.mxu0 0
    %170 = vmatpush1.bf16.msra.mxu0 0
    %171 = vmatprep.subr.bf16.mxu0 0
    %172 = vmatpush1.bf16.msra.mxu0 0
    %173 = vmatprep.mubr.bf16.mxu0 0
    %174 = vmatmul.mubr.bf16.gmra.mrb[0].mxu0 %v139
    %v175 = vpop.f32.mrb[0].mxu0
    %v176 = vadd.f32 0.0, %v175
    %v177 = vpop.f32.mrb[0].mxu0
    %v178 = vadd.f32 0.0, %v177
    %v179 = vpop.f32.mrb[0].mxu0
    %v180 = vpop.f32.mrb[0].mxu0
    %181 = vdwg.mxu0
    %v182 = vadd.f32 %v95, %v176
    %v183 = vadd.f32 %v96, %v178
    %v184 = vxor.u32 %v182, 2147483648
    %v185 = vxor.u32 %v183, 2147483648
    %v186 = vmul.f32 %v184, 1.442695
    %v187 = vpow.pop %v186
    %v188 = vmul.f32 %v185, 1.442695
    %v189 = vpow.pop %v188
    %v190 = vadd.f32 %v187, 1.0
    %v191 = vadd.f32 %v189, 1.0
    %v192 = vrcp.pop %v190
    %v193 = vmul.f32 1.0, %v192
    %v194 = vrcp.pop %v191
    %v195 = vmul.f32 1.0, %v194
    %v196 = vmul.f32 %v195, 2.0
    %v197 = vsub.f32 %v196, 1.0
    %v198 = vmul.f32 %v193, 0.0
    %200 = vrot.lane.b32.xlu0 %v197, 64
    %v201 = vpop.permute.xlu0 %200
    %v203 = vmul.f32 %v193, %v201
    %205 = vrot.lane.b32.xlu0 %v203, 64
    %v206 = vpop.permute.xlu0 %205
    %v208 = vadd.f32 %v198, %v206
    %v209 = vtanh.pop %v208
    %211 = vrot.lane.b32.xlu0 %v209, 64
    %v212 = vpop.permute.xlu0 %211
    %v214 = vmul.f32 %v195, %v212
    %215 = vset.pattern.permute.xlu0 1
    %216 = vperm.xlu0 %215, %v33
    %v217 = vpop.permute.xlu0 %216
    %v219 = vmul.f32 %v217, %v70
    %v220 = vmul.f32 %v217, %v74
    %v221 = vadd.f32 %v219, %v90
    %v222 = vadd.f32 %v220, %v94
    %v223 = vpack.c.bf16 %v214, %v214
    %v225 = vsel %vm137, %v223, 0
    %227 = vmatprep.subr.bf16.mxu0 %v122
    %228 = vmatpush1.bf16.msra.mxu0 %v121
    %229 = vmatprep.subr.bf16.mxu0 %v124
    %230 = vmatpush1.bf16.msra.mxu0 %v123
    %231 = vmatprep.subr.bf16.mxu0 %v126
    %232 = vmatpush1.bf16.msra.mxu0 %v125
    %233 = vmatprep.subr.bf16.mxu0 %v128
    %234 = vmatpush1.bf16.msra.mxu0 %v127
    %235 = vmatprep.subr.bf16.mxu0 0
    %236 = vmatpush1.bf16.msra.mxu0 0
    %237 = vmatprep.subr.bf16.mxu0 0
    %238 = vmatpush1.bf16.msra.mxu0 0
    %239 = vmatprep.subr.bf16.mxu0 0
    %240 = vmatpush1.bf16.msra.mxu0 0
    %241 = vmatprep.subr.bf16.mxu0 0
    %242 = vmatpush1.bf16.msra.mxu0 0
    %243 = vmatprep.subr.bf16.mxu0 0
    %244 = vmatpush1.bf16.msra.mxu0 0
    %245 = vmatprep.subr.bf16.mxu0 0
    %246 = vmatpush1.bf16.msra.mxu0 0
    %247 = vmatprep.subr.bf16.mxu0 0
    %248 = vmatpush1.bf16.msra.mxu0 0
    %249 = vmatprep.subr.bf16.mxu0 0
    %250 = vmatpush1.bf16.msra.mxu0 0
    %251 = vmatprep.subr.bf16.mxu0 0
    %252 = vmatpush1.bf16.msra.mxu0 0
    %253 = vmatprep.subr.bf16.mxu0 0
    %254 = vmatpush1.bf16.msra.mxu0 0
    %255 = vmatprep.subr.bf16.mxu0 0
    %256 = vmatpush1.bf16.msra.mxu0 0
    %257 = vmatprep.subr.bf16.mxu0 0
    %258 = vmatpush1.bf16.msra.mxu0 0
    %259 = vmatprep.mubr.bf16.mxu0 0
    %260 = vmatmul.mubr.bf16.gmra.mrb[0].mxu0 %v225
    %v261 = vpop.f32.mrb[0].mxu0
    %v262 = vadd.f32 0.0, %v261
    %v263 = vpop.f32.mrb[0].mxu0
    %v264 = vadd.f32 0.0, %v263
    %v265 = vpop.f32.mrb[0].mxu0
    %v266 = vpop.f32.mrb[0].mxu0
    %267 = vdwg.mxu0
    %v268 = vadd.f32 %v221, %v262
    %v269 = vadd.f32 %v222, %v264
    %v270 = vxor.u32 %v268, 2147483648
    %v271 = vxor.u32 %v269, 2147483648
    %v272 = vmul.f32 %v270, 1.442695
    %v273 = vpow.pop %v272
    %v274 = vmul.f32 %v271, 1.442695
    %v275 = vpow.pop %v274
    %v276 = vadd.f32 %v273, 1.0
    %v277 = vadd.f32 %v275, 1.0
    %v278 = vrcp.pop %v276
    %v279 = vmul.f32 1.0, %v278
    %v280 = vrcp.pop %v277
    %v281 = vmul.f32 1.0, %v280
    %v282 = vmul.f32 %v281, 2.0
    %v283 = vsub.f32 %v282, 1.0
    %v284 = vmul.f32 %v279, %v208
    %286 = vrot.lane.b32.xlu0 %v283, 64
    %v287 = vpop.permute.xlu0 %286
    %v289 = vmul.f32 %v279, %v287
    %291 = vrot.lane.b32.xlu0 %v289, 64
    %v292 = vpop.permute.xlu0 %291
    %v294 = vadd.f32 %v284, %v292
    %v295 = vtanh.pop %v294
    %297 = vrot.lane.b32.xlu0 %v295, 64
    %v298 = vpop.permute.xlu0 %297
    %v300 = vmul.f32 %v281, %v298
    %301 = vset.pattern.permute.xlu0 2
    %302 = vperm.xlu0 %301, %v33
    %v303 = vpop.permute.xlu0 %302
    %v305 = vmul.f32 %v303, %v70
    %v306 = vmul.f32 %v303, %v74
    %v307 = vadd.f32 %v305, %v90
    %v308 = vadd.f32 %v306, %v94
    %v309 = vpack.c.bf16 %v300, %v300
    %v311 = vsel %vm137, %v309, 0
    %313 = vmatprep.subr.bf16.mxu0 %v122
    %314 = vmatpush1.bf16.msra.mxu0 %v121
    %315 = vmatprep.subr.bf16.mxu0 %v124
    %316 = vmatpush1.bf16.msra.mxu0 %v123
    %317 = vmatprep.subr.bf16.mxu0 %v126
    %318 = vmatpush1.bf16.msra.mxu0 %v125
    %319 = vmatprep.subr.bf16.mxu0 %v128
    %320 = vmatpush1.bf16.msra.mxu0 %v127
    %321 = vmatprep.subr.bf16.mxu0 0
    %322 = vmatpush1.bf16.msra.mxu0 0
    %323 = vmatprep.subr.bf16.mxu0 0
    %324 = vmatpush1.bf16.msra.mxu0 0
    %325 = vmatprep.subr.bf16.mxu0 0
    %326 = vmatpush1.bf16.msra.mxu0 0
    %327 = vmatprep.subr.bf16.mxu0 0
    %328 = vmatpush1.bf16.msra.mxu0 0
    %329 = vmatprep.subr.bf16.mxu0 0
    %330 = vmatpush1.bf16.msra.mxu0 0
    %331 = vmatprep.subr.bf16.mxu0 0
    %332 = vmatpush1.bf16.msra.mxu0 0
    %333 = vmatprep.subr.bf16.mxu0 0
    %334 = vmatpush1.bf16.msra.mxu0 0
    %335 = vmatprep.subr.bf16.mxu0 0
    %336 = vmatpush1.bf16.msra.mxu0 0
    %337 = vmatprep.subr.bf16.mxu0 0
    %338 = vmatpush1.bf16.msra.mxu0 0
    %339 = vmatprep.subr.bf16.mxu0 0
    %340 = vmatpush1.bf16.msra.mxu0 0
    %341 = vmatprep.subr.bf16.mxu0 0
    %342 = vmatpush1.bf16.msra.mxu0 0
    %343 = vmatprep.subr.bf16.mxu0 0
    %344 = vmatpush1.bf16.msra.mxu0 0
    %345 = vmatprep.mubr.bf16.mxu0 0
    %346 = vmatmul.mubr.bf16.gmra.mrb[0].mxu0 %v311
    %v347 = vpop.f32.mrb[0].mxu0
    %v348 = vadd.f32 0.0, %v347
    %v349 = vpop.f32.mrb[0].mxu0
    %v350 = vadd.f32 0.0, %v349
    %v351 = vpop.f32.mrb[0].mxu0
    %v352 = vpop.f32.mrb[0].mxu0
    %353 = vdwg.mxu0
    %v354 = vadd.f32 %v307, %v348
    %v355 = vadd.f32 %v308, %v350
    %v356 = vxor.u32 %v354, 2147483648
    %v357 = vxor.u32 %v355, 2147483648
    %v358 = vmul.f32 %v356, 1.442695
    %v359 = vpow.pop %v358
    %v360 = vmul.f32 %v357, 1.442695
    %v361 = vpow.pop %v360
    %v362 = vadd.f32 %v359, 1.0
    %v363 = vadd.f32 %v361, 1.0
    %v364 = vrcp.pop %v362
    %v365 = vmul.f32 1.0, %v364
    %v366 = vrcp.pop %v363
    %v367 = vmul.f32 1.0, %v366
    %v368 = vmul.f32 %v367, 2.0
    %v369 = vsub.f32 %v368, 1.0
    %v370 = vmul.f32 %v365, %v294
    %372 = vrot.lane.b32.xlu0 %v369, 64
    %v373 = vpop.permute.xlu0 %372
    %v375 = vmul.f32 %v365, %v373
    %377 = vrot.lane.b32.xlu0 %v375, 64
    %v378 = vpop.permute.xlu0 %377
    %v380 = vadd.f32 %v370, %v378
    %v381 = vtanh.pop %v380
    %383 = vrot.lane.b32.xlu0 %v381, 64
    %v384 = vpop.permute.xlu0 %383
    %v386 = vmul.f32 %v367, %v384
    %387 = vset.pattern.permute.xlu0 3
    %388 = vperm.xlu0 %387, %v33
    %v389 = vpop.permute.xlu0 %388
    %v391 = vmul.f32 %v389, %v70
    %v392 = vmul.f32 %v389, %v74
    %v393 = vadd.f32 %v391, %v90
    %v394 = vadd.f32 %v392, %v94
    %v395 = vpack.c.bf16 %v386, %v386
    %v397 = vsel %vm137, %v395, 0
    %399 = vmatprep.subr.bf16.mxu0 %v122
    %400 = vmatpush1.bf16.msra.mxu0 %v121
    %401 = vmatprep.subr.bf16.mxu0 %v124
    %402 = vmatpush1.bf16.msra.mxu0 %v123
    %403 = vmatprep.subr.bf16.mxu0 %v126
    %404 = vmatpush1.bf16.msra.mxu0 %v125
    %405 = vmatprep.subr.bf16.mxu0 %v128
    %406 = vmatpush1.bf16.msra.mxu0 %v127
    %407 = vmatprep.subr.bf16.mxu0 0
    %408 = vmatpush1.bf16.msra.mxu0 0
    %409 = vmatprep.subr.bf16.mxu0 0
    %410 = vmatpush1.bf16.msra.mxu0 0
    %411 = vmatprep.subr.bf16.mxu0 0
    %412 = vmatpush1.bf16.msra.mxu0 0
    %413 = vmatprep.subr.bf16.mxu0 0
    %414 = vmatpush1.bf16.msra.mxu0 0
    %415 = vmatprep.subr.bf16.mxu0 0
    %416 = vmatpush1.bf16.msra.mxu0 0
    %417 = vmatprep.subr.bf16.mxu0 0
    %418 = vmatpush1.bf16.msra.mxu0 0
    %419 = vmatprep.subr.bf16.mxu0 0
    %420 = vmatpush1.bf16.msra.mxu0 0
    %421 = vmatprep.subr.bf16.mxu0 0
    %422 = vmatpush1.bf16.msra.mxu0 0
    %423 = vmatprep.subr.bf16.mxu0 0
    %424 = vmatpush1.bf16.msra.mxu0 0
    %425 = vmatprep.subr.bf16.mxu0 0
    %426 = vmatpush1.bf16.msra.mxu0 0
    %427 = vmatprep.subr.bf16.mxu0 0
    %428 = vmatpush1.bf16.msra.mxu0 0
    %429 = vmatprep.subr.bf16.mxu0 0
    %430 = vmatpush1.bf16.msra.mxu0 0
    %431 = vmatprep.mubr.bf16.mxu0 0
    %432 = vmatmul.mubr.bf16.gmra.mrb[0].mxu0 %v397
    %v433 = vpop.f32.mrb[0].mxu0
    %v434 = vadd.f32 0.0, %v433
    %v435 = vpop.f32.mrb[0].mxu0
    %v436 = vadd.f32 0.0, %v435
    %v437 = vpop.f32.mrb[0].mxu0
    %v438 = vpop.f32.mrb[0].mxu0
    %439 = vdwg.mxu0
    %v440 = vadd.f32 %v393, %v434
    %v441 = vadd.f32 %v394, %v436
    %v442 = vxor.u32 %v440, 2147483648
    %v443 = vxor.u32 %v441, 2147483648
    %v444 = vmul.f32 %v442, 1.442695
    %v445 = vpow.pop %v444
    %v446 = vmul.f32 %v443, 1.442695
    %v447 = vpow.pop %v446
    %v448 = vadd.f32 %v445, 1.0
    %v449 = vadd.f32 %v447, 1.0
    %v450 = vrcp.pop %v448
    %v451 = vmul.f32 1.0, %v450
    %v452 = vrcp.pop %v449
    %v453 = vmul.f32 1.0, %v452
    %v454 = vmul.f32 %v453, 2.0
    %v455 = vsub.f32 %v454, 1.0
    %v456 = vmul.f32 %v451, %v380
    %458 = vrot.lane.b32.xlu0 %v455, 64
    %v459 = vpop.permute.xlu0 %458
    %v461 = vmul.f32 %v451, %v459
    %463 = vrot.lane.b32.xlu0 %v461, 64
    %v464 = vpop.permute.xlu0 %463
    %v466 = vadd.f32 %v456, %v464
    %v467 = vtanh.pop %v466
    %469 = vrot.lane.b32.xlu0 %v467, 64
    %v470 = vpop.permute.xlu0 %469
    %v472 = vmul.f32 %v453, %v470
    %473 = vset.pattern.permute.xlu0 4
    %474 = vperm.xlu0 %473, %v33
    %v475 = vpop.permute.xlu0 %474
    %v477 = vmul.f32 %v475, %v70
    %v478 = vmul.f32 %v475, %v74
    %v479 = vadd.f32 %v477, %v90
    %v480 = vadd.f32 %v478, %v94
    %v481 = vpack.c.bf16 %v472, %v472
    %v483 = vsel %vm137, %v481, 0
    %485 = vmatprep.subr.bf16.mxu0 %v122
    %486 = vmatpush1.bf16.msra.mxu0 %v121
    %487 = vmatprep.subr.bf16.mxu0 %v124
    %488 = vmatpush1.bf16.msra.mxu0 %v123
    %489 = vmatprep.subr.bf16.mxu0 %v126
    %490 = vmatpush1.bf16.msra.mxu0 %v125
    %491 = vmatprep.subr.bf16.mxu0 %v128
    %492 = vmatpush1.bf16.msra.mxu0 %v127
    %493 = vmatprep.subr.bf16.mxu0 0
    %494 = vmatpush1.bf16.msra.mxu0 0
    %495 = vmatprep.subr.bf16.mxu0 0
    %496 = vmatpush1.bf16.msra.mxu0 0
    %497 = vmatprep.subr.bf16.mxu0 0
    %498 = vmatpush1.bf16.msra.mxu0 0
    %499 = vmatprep.subr.bf16.mxu0 0
    %500 = vmatpush1.bf16.msra.mxu0 0
    %501 = vmatprep.subr.bf16.mxu0 0
    %502 = vmatpush1.bf16.msra.mxu0 0
    %503 = vmatprep.subr.bf16.mxu0 0
    %504 = vmatpush1.bf16.msra.mxu0 0
    %505 = vmatprep.subr.bf16.mxu0 0
    %506 = vmatpush1.bf16.msra.mxu0 0
    %507 = vmatprep.subr.bf16.mxu0 0
    %508 = vmatpush1.bf16.msra.mxu0 0
    %509 = vmatprep.subr.bf16.mxu0 0
    %510 = vmatpush1.bf16.msra.mxu0 0
    %511 = vmatprep.subr.bf16.mxu0 0
    %512 = vmatpush1.bf16.msra.mxu0 0
    %513 = vmatprep.subr.bf16.mxu0 0
    %514 = vmatpush1.bf16.msra.mxu0 0
    %515 = vmatprep.subr.bf16.mxu0 0
    %516 = vmatpush1.bf16.msra.mxu0 0
    %517 = vmatprep.mubr.bf16.mxu0 0
    %518 = vmatmul.mubr.bf16.gmra.mrb[0].mxu0 %v483
    %v519 = vpop.f32.mrb[0].mxu0
    %v520 = vadd.f32 0.0, %v519
    %v521 = vpop.f32.mrb[0].mxu0
    %v522 = vadd.f32 0.0, %v521
    %v523 = vpop.f32.mrb[0].mxu0
    %v524 = vpop.f32.mrb[0].mxu0
    %525 = vdwg.mxu0
    %v526 = vadd.f32 %v479, %v520
    %v527 = vadd.f32 %v480, %v522
    %v528 = vxor.u32 %v526, 2147483648
    %v529 = vxor.u32 %v527, 2147483648
    %v530 = vmul.f32 %v528, 1.442695
    %v531 = vpow.pop %v530
    %v532 = vmul.f32 %v529, 1.442695
    %v533 = vpow.pop %v532
    %v534 = vadd.f32 %v531, 1.0
    %v535 = vadd.f32 %v533, 1.0
    %v536 = vrcp.pop %v534
    %v537 = vmul.f32 1.0, %v536
    %v538 = vrcp.pop %v535
    %v539 = vmul.f32 1.0, %v538
    %v540 = vmul.f32 %v539, 2.0
    %v541 = vsub.f32 %v540, 1.0
    %v542 = vmul.f32 %v537, %v466
    %544 = vrot.lane.b32.xlu0 %v541, 64
    %v545 = vpop.permute.xlu0 %544
    %v547 = vmul.f32 %v537, %v545
    %549 = vrot.lane.b32.xlu0 %v547, 64
    %v550 = vpop.permute.xlu0 %549
    %v552 = vadd.f32 %v542, %v550
    %v553 = vtanh.pop %v552
    %555 = vrot.lane.b32.xlu0 %v553, 64
    %v556 = vpop.permute.xlu0 %555
    %v558 = vmul.f32 %v539, %v556
    %559 = vset.pattern.permute.xlu0 5
    %560 = vperm.xlu0 %559, %v33
    %v561 = vpop.permute.xlu0 %560
    %v563 = vmul.f32 %v561, %v70
    %v564 = vmul.f32 %v561, %v74
    %v565 = vadd.f32 %v563, %v90
    %v566 = vadd.f32 %v564, %v94
    %v567 = vpack.c.bf16 %v558, %v558
    %v569 = vsel %vm137, %v567, 0
    %571 = vmatprep.subr.bf16.mxu0 %v122
    %572 = vmatpush1.bf16.msra.mxu0 %v121
    %573 = vmatprep.subr.bf16.mxu0 %v124
    %574 = vmatpush1.bf16.msra.mxu0 %v123
    %575 = vmatprep.subr.bf16.mxu0 %v126
    %576 = vmatpush1.bf16.msra.mxu0 %v125
    %577 = vmatprep.subr.bf16.mxu0 %v128
    %578 = vmatpush1.bf16.msra.mxu0 %v127
    %579 = vmatprep.subr.bf16.mxu0 0
    %580 = vmatpush1.bf16.msra.mxu0 0
    %581 = vmatprep.subr.bf16.mxu0 0
    %582 = vmatpush1.bf16.msra.mxu0 0
    %583 = vmatprep.subr.bf16.mxu0 0
    %584 = vmatpush1.bf16.msra.mxu0 0
    %585 = vmatprep.subr.bf16.mxu0 0
    %586 = vmatpush1.bf16.msra.mxu0 0
    %587 = vmatprep.subr.bf16.mxu0 0
    %588 = vmatpush1.bf16.msra.mxu0 0
    %589 = vmatprep.subr.bf16.mxu0 0
    %590 = vmatpush1.bf16.msra.mxu0 0
    %591 = vmatprep.subr.bf16.mxu0 0
    %592 = vmatpush1.bf16.msra.mxu0 0
    %593 = vmatprep.subr.bf16.mxu0 0
    %594 = vmatpush1.bf16.msra.mxu0 0
    %595 = vmatprep.subr.bf16.mxu0 0
    %596 = vmatpush1.bf16.msra.mxu0 0
    %597 = vmatprep.subr.bf16.mxu0 0
    %598 = vmatpush1.bf16.msra.mxu0 0
    %599 = vmatprep.subr.bf16.mxu0 0
    %600 = vmatpush1.bf16.msra.mxu0 0
    %601 = vmatprep.subr.bf16.mxu0 0
    %602 = vmatpush1.bf16.msra.mxu0 0
    %603 = vmatprep.mubr.bf16.mxu0 0
    %604 = vmatmul.mubr.bf16.gmra.mrb[0].mxu0 %v569
    %v605 = vpop.f32.mrb[0].mxu0
    %v606 = vadd.f32 0.0, %v605
    %v607 = vpop.f32.mrb[0].mxu0
    %v608 = vadd.f32 0.0, %v607
    %v609 = vpop.f32.mrb[0].mxu0
    %v610 = vpop.f32.mrb[0].mxu0
    %611 = vdwg.mxu0
    %v612 = vadd.f32 %v565, %v606
    %v613 = vadd.f32 %v566, %v608
    %v614 = vxor.u32 %v612, 2147483648
    %v615 = vxor.u32 %v613, 2147483648
    %v616 = vmul.f32 %v614, 1.442695
    %v617 = vpow.pop %v616
    %v618 = vmul.f32 %v615, 1.442695
    %v619 = vpow.pop %v618
    %v620 = vadd.f32 %v617, 1.0
    %v621 = vadd.f32 %v619, 1.0
    %v622 = vrcp.pop %v620
    %v623 = vmul.f32 1.0, %v622
    %v624 = vrcp.pop %v621
    %v625 = vmul.f32 1.0, %v624
    %v626 = vmul.f32 %v625, 2.0
    %v627 = vsub.f32 %v626, 1.0
    %v628 = vmul.f32 %v623, %v552
    %630 = vrot.lane.b32.xlu0 %v627, 64
    %v631 = vpop.permute.xlu0 %630
    %v633 = vmul.f32 %v623, %v631
    %635 = vrot.lane.b32.xlu0 %v633, 64
    %v636 = vpop.permute.xlu0 %635
    %v638 = vadd.f32 %v628, %v636
    %v639 = vtanh.pop %v638
    %641 = vrot.lane.b32.xlu0 %v639, 64
    %v642 = vpop.permute.xlu0 %641
    %v644 = vmul.f32 %v625, %v642
    %645 = vset.pattern.permute.xlu0 6
    %646 = vperm.xlu0 %645, %v33
    %v647 = vpop.permute.xlu0 %646
    %v649 = vmul.f32 %v647, %v70
    %v650 = vmul.f32 %v647, %v74
    %v651 = vadd.f32 %v649, %v90
    %v652 = vadd.f32 %v650, %v94
    %v653 = vpack.c.bf16 %v644, %v644
    %v655 = vsel %vm137, %v653, 0
    %657 = vmatprep.subr.bf16.mxu0 %v122
    %658 = vmatpush1.bf16.msra.mxu0 %v121
    %659 = vmatprep.subr.bf16.mxu0 %v124
    %660 = vmatpush1.bf16.msra.mxu0 %v123
    %661 = vmatprep.subr.bf16.mxu0 %v126
    %662 = vmatpush1.bf16.msra.mxu0 %v125
    %663 = vmatprep.subr.bf16.mxu0 %v128
    %664 = vmatpush1.bf16.msra.mxu0 %v127
    %665 = vmatprep.subr.bf16.mxu0 0
    %666 = vmatpush1.bf16.msra.mxu0 0
    %667 = vmatprep.subr.bf16.mxu0 0
    %668 = vmatpush1.bf16.msra.mxu0 0
    %669 = vmatprep.subr.bf16.mxu0 0
    %670 = vmatpush1.bf16.msra.mxu0 0
    %671 = vmatprep.subr.bf16.mxu0 0
    %672 = vmatpush1.bf16.msra.mxu0 0
    %673 = vmatprep.subr.bf16.mxu0 0
    %674 = vmatpush1.bf16.msra.mxu0 0
    %675 = vmatprep.subr.bf16.mxu0 0
    %676 = vmatpush1.bf16.msra.mxu0 0
    %677 = vmatprep.subr.bf16.mxu0 0
    %678 = vmatpush1.bf16.msra.mxu0 0
    %679 = vmatprep.subr.bf16.mxu0 0
    %680 = vmatpush1.bf16.msra.mxu0 0
    %681 = vmatprep.subr.bf16.mxu0 0
    %682 = vmatpush1.bf16.msra.mxu0 0
    %683 = vmatprep.subr.bf16.mxu0 0
    %684 = vmatpush1.bf16.msra.mxu0 0
    %685 = vmatprep.subr.bf16.mxu0 0
    %686 = vmatpush1.bf16.msra.mxu0 0
    %687 = vmatprep.subr.bf16.mxu0 0
    %688 = vmatpush1.bf16.msra.mxu0 0
    %689 = vmatprep.mubr.bf16.mxu0 0
    %690 = vmatmul.mubr.bf16.gmra.mrb[0].mxu0 %v655
    %v691 = vpop.f32.mrb[0].mxu0
    %v692 = vadd.f32 0.0, %v691
    %v693 = vpop.f32.mrb[0].mxu0
    %v694 = vadd.f32 0.0, %v693
    %v695 = vpop.f32.mrb[0].mxu0
    %v696 = vpop.f32.mrb[0].mxu0
    %697 = vdwg.mxu0
    %v698 = vadd.f32 %v651, %v692
    %v699 = vadd.f32 %v652, %v694
    %v700 = vxor.u32 %v698, 2147483648
    %v701 = vxor.u32 %v699, 2147483648
    %v702 = vmul.f32 %v700, 1.442695
    %v703 = vpow.pop %v702
    %v704 = vmul.f32 %v701, 1.442695
    %v705 = vpow.pop %v704
    %v706 = vadd.f32 %v703, 1.0
    %v707 = vadd.f32 %v705, 1.0
    %v708 = vrcp.pop %v706
    %v709 = vmul.f32 1.0, %v708
    %v710 = vrcp.pop %v707
    %v711 = vmul.f32 1.0, %v710
    %v712 = vmul.f32 %v711, 2.0
    %v713 = vsub.f32 %v712, 1.0
    %v714 = vmul.f32 %v709, %v638
    %716 = vrot.lane.b32.xlu0 %v713, 64
    %v717 = vpop.permute.xlu0 %716
    %v719 = vmul.f32 %v709, %v717
    %721 = vrot.lane.b32.xlu0 %v719, 64
    %v722 = vpop.permute.xlu0 %721
    %v724 = vadd.f32 %v714, %v722
    %v725 = vtanh.pop %v724
    %727 = vrot.lane.b32.xlu0 %v725, 64
    %v728 = vpop.permute.xlu0 %727
    %v730 = vmul.f32 %v711, %v728
    %731 = vset.pattern.permute.xlu0 7
    %732 = vperm.xlu0 %731, %v33
    %v733 = vpop.permute.xlu0 %732
    %v735 = vmul.f32 %v733, %v70
    %v736 = vmul.f32 %v733, %v74
    %v737 = vadd.f32 %v735, %v90
    %v738 = vadd.f32 %v736, %v94
    %v739 = vpack.c.bf16 %v730, %v730
    %v741 = vsel %vm137, %v739, 0
    %743 = vmatprep.subr.bf16.mxu0 %v122
    %744 = vmatpush1.bf16.msra.mxu0 %v121
    %745 = vmatprep.subr.bf16.mxu0 %v124
    %746 = vmatpush1.bf16.msra.mxu0 %v123
    %747 = vmatprep.subr.bf16.mxu0 %v126
    %748 = vmatpush1.bf16.msra.mxu0 %v125
    %749 = vmatprep.subr.bf16.mxu0 %v128
    %750 = vmatpush1.bf16.msra.mxu0 %v127
    %751 = vmatprep.subr.bf16.mxu0 0
    %752 = vmatpush1.bf16.msra.mxu0 0
    %753 = vmatprep.subr.bf16.mxu0 0
    %754 = vmatpush1.bf16.msra.mxu0 0
    %755 = vmatprep.subr.bf16.mxu0 0
    %756 = vmatpush1.bf16.msra.mxu0 0
    %757 = vmatprep.subr.bf16.mxu0 0
    %758 = vmatpush1.bf16.msra.mxu0 0
    %759 = vmatprep.subr.bf16.mxu0 0
    %760 = vmatpush1.bf16.msra.mxu0 0
    %761 = vmatprep.subr.bf16.mxu0 0
    %762 = vmatpush1.bf16.msra.mxu0 0
    %763 = vmatprep.subr.bf16.mxu0 0
    %764 = vmatpush1.bf16.msra.mxu0 0
    %765 = vmatprep.subr.bf16.mxu0 0
    %766 = vmatpush1.bf16.msra.mxu0 0
    %767 = vmatprep.subr.bf16.mxu0 0
    %768 = vmatpush1.bf16.msra.mxu0 0
    %769 = vmatprep.subr.bf16.mxu0 0
    %770 = vmatpush1.bf16.msra.mxu0 0
    %771 = vmatprep.subr.bf16.mxu0 0
    %772 = vmatpush1.bf16.msra.mxu0 0
    %773 = vmatprep.subr.bf16.mxu0 0
    %774 = vmatpush1.bf16.msra.mxu0 0
    %775 = vmatprep.mubr.bf16.mxu0 0
    %776 = vmatmul.mubr.bf16.gmra.mrb[0].mxu0 %v741
    %v777 = vpop.f32.mrb[0].mxu0
    %v778 = vadd.f32 0.0, %v777
    %v779 = vpop.f32.mrb[0].mxu0
    %v780 = vadd.f32 0.0, %v779
    %v781 = vpop.f32.mrb[0].mxu0
    %v782 = vpop.f32.mrb[0].mxu0
    %783 = vdwg.mxu0
    %v784 = vadd.f32 %v737, %v778
    %v785 = vadd.f32 %v738, %v780
    %v786 = vxor.u32 %v784, 2147483648
    %v787 = vxor.u32 %v785, 2147483648
    %v788 = vmul.f32 %v786, 1.442695
    %v789 = vpow.pop %v788
    %v790 = vmul.f32 %v787, 1.442695
    %v791 = vpow.pop %v790
    %v792 = vadd.f32 %v789, 1.0
    %v793 = vadd.f32 %v791, 1.0
    %v794 = vrcp.pop %v792
    %v795 = vmul.f32 1.0, %v794
    %v796 = vrcp.pop %v793
    %v797 = vmul.f32 1.0, %v796
    %v798 = vmul.f32 %v797, 2.0
    %v799 = vsub.f32 %v798, 1.0
    %v800 = vmul.f32 %v795, %v724
    %802 = vrot.lane.b32.xlu0 %v799, 64
    %v803 = vpop.permute.xlu0 %802
    %v805 = vmul.f32 %v795, %v803
    %807 = vrot.lane.b32.xlu0 %v805, 64
    %v808 = vpop.permute.xlu0 %807
    %v810 = vadd.f32 %v800, %v808
    %v811 = vpack.c.bf16 %v810, %v810
    %v812 = vlaneseq
    %v813 = vshrl.u32 %v812, 7
    %v814 = vsub.s32 2, %v813
    %v815 = vrot.slane %v34, %v814
    %817 = vrot.lane.b32.xlu0 %v811, 64
    %v818 = vpop.permute.xlu0 %817
    %v827 = vunpack.c.l.b16 %v43
    %v828 = vunpack.c.l.b16 %v44
    %v829 = vunpack.c.l.b16 %v45
    %v830 = vunpack.c.l.b16 %v46
    %v831 = vunpack.c.l.b16 %v47
    %v832 = vunpack.c.l.b16 %v48
    %v833 = vunpack.c.l.b16 %v49
    %v834 = vunpack.c.l.b16 %v50
    %v835 = vpack.c.b16 %v828, %v827
    %v836 = vpack.c.b16 %v830, %v829
    %v837 = vpack.c.b16 %v832, %v831
    %v838 = vpack.c.b16 %v834, %v833
    %v844 = vsel %vm137, %v818, 0
    %846 = vmatprep.subr.bf16.mxu0 0
    %847 = vmatpush1.bf16.msra.mxu0 %v835
    %848 = vmatprep.subr.bf16.mxu0 0
    %849 = vmatpush1.bf16.msra.mxu0 %v836
    %850 = vmatprep.subr.bf16.mxu0 0
    %851 = vmatpush1.bf16.msra.mxu0 %v837
    %852 = vmatprep.subr.bf16.mxu0 0
    %853 = vmatpush1.bf16.msra.mxu0 %v838
    %854 = vmatprep.subr.bf16.mxu0 0
    %855 = vmatpush1.bf16.msra.mxu0 0
    %856 = vmatprep.subr.bf16.mxu0 0
    %857 = vmatpush1.bf16.msra.mxu0 0
    %858 = vmatprep.subr.bf16.mxu0 0
    %859 = vmatpush1.bf16.msra.mxu0 0
    %860 = vmatprep.subr.bf16.mxu0 0
    %861 = vmatpush1.bf16.msra.mxu0 0
    %862 = vmatprep.subr.bf16.mxu0 0
    %863 = vmatpush1.bf16.msra.mxu0 0
    %864 = vmatprep.subr.bf16.mxu0 0
    %865 = vmatpush1.bf16.msra.mxu0 0
    %866 = vmatprep.subr.bf16.mxu0 0
    %867 = vmatpush1.bf16.msra.mxu0 0
    %868 = vmatprep.subr.bf16.mxu0 0
    %869 = vmatpush1.bf16.msra.mxu0 0
    %870 = vmatprep.subr.bf16.mxu0 0
    %871 = vmatpush1.bf16.msra.mxu0 0
    %872 = vmatprep.subr.bf16.mxu0 0
    %873 = vmatpush1.bf16.msra.mxu0 0
    %874 = vmatprep.subr.bf16.mxu0 0
    %875 = vmatpush1.bf16.msra.mxu0 0
    %876 = vmatprep.subr.bf16.mxu0 0
    %877 = vmatpush1.bf16.msra.mxu0 0
    %878 = vmatprep.mubr.bf16.mxu0 0
    %879 = vmatmul.mubr.bf16.gmra.mrb[0].mxu0 %v844
    %v880 = vpop.f32.mrb[0].mxu0
    %v881 = vadd.f32 %v815, %v880
    %v882 = vpop.f32.mrb[0].mxu0
    %v883 = vpop.f32.mrb[0].mxu0
    %v884 = vpop.f32.mrb[0].mxu0
    %885 = vdwg.mxu0
    %vm886 = vcmask 33792
    %887 = vst.msk [vmem:[#allocation5] sm:$0x3] %vm886, %v881
    // Predicated region
    $region22: #{net_forward.1} parent=1 // pred_check
      _
    $region23: #{net_forward.1} parent=1 // pred_check_branch
      %889 = sbr.rel (0) target = $region25
    $region24: #{net_forward.1} parent=1 // pred_region
      %s891 = ssub.s32 32, 32
      %892 = vsyncadd [#allocation4], %s891
      %s894 = sshll.u32 [#allocation5], 4
      %s895 = int_to_ptr.vmem [resolvable:$true] %s894
      %897 = dma.vmem_to_hbm [thread:$0]  %s895, 32, %s4, [#allocation4]
    $region25: #{net_forward.1} parent=1 // pred_fallthru
      _
    // Predicated region
    $region26: #{net_forward.1} parent=1 // pred_check
      _
    $region27: #{net_forward.1} parent=1 // pred_check_branch
      %899 = sbr.rel (0) target = $region29
    $region28: #{net_forward.1} parent=1 // pred_region
      %900 = dma.done [#allocation4], 32
    $region29: #{net_forward.1} parent=1 // pred_fallthru
      _
    %901 = vsyncpa [#allocation3], 1
    %902 = vsyncpa [#allocation4], 1

</llo_original>
